<compile_context>
chip_gen: v7x
topology: tpu7x:2x2x1
jax: 0.10.0
libtpu: 0.0.40
codegen_flags: <defaults>
</compile_context>

<pallas_src>
from functools import partial
import math

import jax
import jax.numpy as jnp
from jax.experimental import pallas as pl
from jax.experimental.pallas import tpu as pltpu


def _round_up(x: int, m: int) -> int:
    return ((x + m - 1) // m) * m


def _choose_batch_tile(B: int, block_b: int) -> int:
    """Pick the batch tile.

    Multi-block tiles are multiples of 128 so the lane-dense (3, tb) output
    block stays (8,128)-legal and stores are unmasked; when the batch is big
    enough we keep >= 2 grid steps (v7x has 2 TensorCores).  Small batches use
    a single full-array block (always legal).
    """
    if B >= 2 * 128:
        tb = _round_up(min(block_b, (B + 1) // 2), 128)
        tb = min(tb, _round_up(B, 128))
        if tb < B:
            return tb
    return B


def _vmem_limit_bytes() -> int:
    """Scoped-VMEM budget with headroom: ~48 MiB on v7x, ~96 MiB on v5e/v6e."""
    cap = 64 * 1024 * 1024
    try:
        info = pltpu.get_tpu_info()
        cap = int(getattr(info, "vmem_capacity_bytes", cap))
    except Exception:
        pass
    return int(min(cap * 3 // 4, 100 * 1024 * 1024))


def _prepare_params(params, hidden: int, compute_dtype):
    """Weights of the ReLU stack in compute_dtype; biases / final layer in f32."""
    prepped = []
    n_linear = len(params) // 2 - 1          # = n_layers + 1
    for li in range(n_linear):
        prepped.append(params[2 * li].astype(compute_dtype))       # (in, out)
        prepped.append(params[2 * li + 1].astype(jnp.float32))     # (1, out)
    prepped.append(params[-2].reshape(1, hidden).astype(jnp.float32))  # (1, hidden)
    prepped.append(params[-1].astype(jnp.float32))                     # (1, 1)
    return prepped


def _make_ranknet_kernel(n_layers: int, sigmoid: bool, compute_dtype):
    """Ref layout: (x_i_tile, x_j_tile, w0, b0, ..., w_out_row, b_out, out)."""
    n_param_refs = 2 * (n_layers + 2)

    def kernel(*refs):
        xi_ref, xj_ref = refs[0], refs[1]
        p_refs = refs[2:2 + n_param_refs]
        out_ref = refs[2 + n_param_refs]

        hi = xi_ref[...]
        hj = xj_ref[...]

        # Linear -> (Dropout p=0 elided) -> ReLU, (n_layers + 1) times.
        # Two chains through the same VMEM-resident weights (no concat copy).
        for li in range(n_layers + 1):
            w = p_refs[2 * li][...]          # (in, out)  compute_dtype
            b = p_refs[2 * li + 1][...]      # (1, out)   float32
            hi = jnp.maximum(
                jnp.dot(hi, w, preferred_element_type=jnp.float32) + b, 0.0
            ).astype(compute_dtype)
            hj = jnp.maximum(
                jnp.dot(hj, w, preferred_element_type=jnp.float32) + b, 0.0
            ).astype(compute_dtype)

        # Final Linear(hidden, 1): VPU multiply + lane reduction (avoids a
        # 1-column MXU matmul), then transpose to lane-dense (1, tb) rows.
        w_out = p_refs[-2][...]              # (1, hidden) float32
        b_out = p_refs[-1][...]              # (1, 1)      float32
        si = jnp.sum(hi.astype(jnp.float32) * w_out, axis=-1, keepdims=True) + b_out
        sj = jnp.sum(hj.astype(jnp.float32) * w_out, axis=-1, keepdims=True) + b_out

        si_r = si.T                          # (1, tb) -- cheap XLU transpose
        sj_r = sj.T
        diff = si_r - sj_r
        if sigmoid:
            diff = jax.nn.sigmoid(diff)

        # Single lane-dense store of the (3, tb) result block.
        out_ref[...] = jnp.concatenate([si_r, sj_r, diff], axis=0)

    return kernel


def ranknet_forward(x_i, x_j, params, *, n_layers: int, sigmoid: bool = False,
                    block_b: int = 1024, compute_dtype=jnp.float32):
    """Pallas-backed RankNet.forward.

    params: flat list [w0, b0, ..., w_out, b_out]; weights (in, out), biases (1, out).
    Returns (score_i, score_j, out), each (B, 1) float32.
    """
    B, F = x_i.shape
    hidden = params[0].shape[1]

    tb = _choose_batch_tile(B, block_b)
    n_blocks = pl.cdiv(B, tb)

    x_i = x_i.astype(compute_dtype)
    x_j = x_j.astype(compute_dtype)
    kernel_params = _prepare_params(params, hidden, compute_dtype)

    kernel = _make_ranknet_kernel(n_layers, sigmoid, compute_dtype)

    x_spec = pl.BlockSpec((tb, F), lambda i: (i, 0))
    # Constant index_map -> parameters DMA'd once, VMEM-resident across the grid.
    param_specs = [pl.BlockSpec(p.shape, lambda i: (0, 0)) for p in kernel_params]
    out_spec = pl.BlockSpec((3, tb), lambda i: (0, i))

    packed = pl.pallas_call(
        kernel,
        out_shape=jax.ShapeDtypeStruct((3, B), jnp.float32),
        grid=(n_blocks,),
        in_specs=[x_spec, x_spec] + param_specs,
        out_specs=out_spec,
        compiler_params=pltpu.CompilerParams(
            # Batch tiles are independent -> shard across TensorCores on v7x.
            dimension_semantics=("parallel",),
            vmem_limit_bytes=_vmem_limit_bytes(),
        ),
    )(x_i, x_j, *kernel_params)

    score_i = packed[0][:, None]
    score_j = packed[1][:, None]
    out = packed[2][:, None]
    return score_i, score_j, out


def init_ranknet_params(key, input_size: int, hidden_size: int, n_layers: int):
    """Deterministic init mimicking torch.nn.Linear default U(-1/sqrt(fan_in), +)."""
    dims = [(input_size, hidden_size)]
    dims += [(hidden_size, hidden_size)] * n_layers
    dims += [(hidden_size, 1)]

    params = []
    for (fan_in, fan_out) in dims:
        key, kw, kb = jax.random.split(key, 3)
        bound = 1.0 / math.sqrt(fan_in)
        w = jax.random.uniform(kw, (fan_in, fan_out), jnp.float32, -bound, bound)
        b = jax.random.uniform(kb, (1, fan_out), jnp.float32, -bound, bound)
        params += [w, b]
    return params


def ranknet_reference(x_i, x_j, params, *, n_layers: int, sigmoid: bool = False,
                      compute_dtype=jnp.float32):
    """Pure-JAX reference (mirrors the kernel's dtype handling)."""
    def encode(x):
        h = x.astype(compute_dtype)
        for li in range(n_layers + 1):
            w = params[2 * li].astype(compute_dtype)
            b = params[2 * li + 1]
            h = jnp.maximum(
                jnp.dot(h, w, preferred_element_type=jnp.float32) + b, 0.0
            ).astype(compute_dtype)
        w_out = params[-2].reshape(1, -1)
        return jnp.sum(h.astype(jnp.float32) * w_out, axis=-1, keepdims=True) + params[-1]

    si, sj = encode(x_i), encode(x_j)
    out = si - sj
    if sigmoid:
        out = jax.nn.sigmoid(out)
    return si, sj, out


if __name__ == "__main__":
    # Small shapes consistent with RankNet(input_size, hidden_size, n_layers).
    input_size, hidden_size, n_layers = 128, 32, 3

    key = jax.random.PRNGKey(0)
    kp, kx = jax.random.split(key)
    params = init_ranknet_params(kp, input_size, hidden_size, n_layers)

    configs = [
        # single full-array block
        dict(batch=20, block_b=1024, sigmoid=False, dtype=jnp.float32, atol=2e-5, rtol=1e-5),
        dict(batch=20, block_b=1024, sigmoid=True, dtype=jnp.float32, atol=2e-5, rtol=1e-5),
        # multi-block grid with a ragged last tile (no wrapper padding)
        dict(batch=300, block_b=128, sigmoid=True, dtype=jnp.float32, atol=2e-5, rtol=1e-5),
        # bf16 inputs/weights, f32 accumulation
        dict(batch=300, block_b=128, sigmoid=False, dtype=jnp.bfloat16, atol=5e-3, rtol=2e-2),
    ]

    for cfg in configs:
        kxi, kxj = jax.random.split(jax.random.fold_in(kx, cfg["batch"]))
        x_i = jax.random.normal(kxi, (cfg["batch"], input_size), jnp.float32)
        x_j = jax.random.normal(kxj, (cfg["batch"], input_size), jnp.float32)

        fwd = jax.jit(partial(ranknet_forward, n_layers=n_layers,
                              sigmoid=cfg["sigmoid"], block_b=cfg["block_b"],
                              compute_dtype=cfg["dtype"]))
        score_i, score_j, out = fwd(x_i, x_j, params)
        jax.block_until_ready((score_i, score_j, out))

        ref_si, ref_sj, ref_out = ranknet_reference(
            x_i, x_j, params, n_layers=n_layers, sigmoid=cfg["sigmoid"],
            compute_dtype=cfg["dtype"])

        assert score_i.shape == (cfg["batch"], 1) and out.shape == (cfg["batch"], 1)
        assert jnp.allclose(score_i, ref_si, atol=cfg["atol"], rtol=cfg["rtol"])
        assert jnp.allclose(score_j, ref_sj, atol=cfg["atol"], rtol=cfg["rtol"])
        assert jnp.allclose(out, ref_out, atol=cfg["atol"], rtol=cfg["rtol"])

    print("KERNEL_OK")
</pallas_src>

<mosaic_0001>
module attributes {stable_mosaic.version = 11 : i64} {
  func.func @kernel(%arg0: i32, %arg1: memref<20x128xf32, #tpu.memory_space<vmem>>, %arg2: memref<20x128xf32, #tpu.memory_space<vmem>>, %arg3: memref<128x32xf32, #tpu.memory_space<vmem>>, %arg4: memref<1x32xf32, #tpu.memory_space<vmem>>, %arg5: memref<32x32xf32, #tpu.memory_space<vmem>>, %arg6: memref<1x32xf32, #tpu.memory_space<vmem>>, %arg7: memref<32x32xf32, #tpu.memory_space<vmem>>, %arg8: memref<1x32xf32, #tpu.memory_space<vmem>>, %arg9: memref<32x32xf32, #tpu.memory_space<vmem>>, %arg10: memref<1x32xf32, #tpu.memory_space<vmem>>, %arg11: memref<1x32xf32, #tpu.memory_space<vmem>>, %arg12: memref<1x1xf32, #tpu.memory_space<vmem>>, %arg13: memref<3x20xf32, #tpu.memory_space<vmem>>) attributes {dimension_semantics = [#tpu.dimension_semantics<parallel>], iteration_bounds = array<i64: 1>, scalar_prefetch = 0 : i64, scratch_operands = 0 : i64, tpu.core_type = #tpu.core_type<tc>, window_params = [{transform_indices = @transform_0, window_bounds = array<i64: 20, 128>}, {transform_indices = @transform_1, window_bounds = array<i64: 20, 128>}, {pipeline_mode = #tpu.pipeline_mode<synchronous>, transform_indices = @transform_2, window_bounds = array<i64: 128, 32>}, {pipeline_mode = #tpu.pipeline_mode<synchronous>, transform_indices = @transform_3, window_bounds = array<i64: 1, 32>}, {pipeline_mode = #tpu.pipeline_mode<synchronous>, transform_indices = @transform_4, window_bounds = array<i64: 32, 32>}, {pipeline_mode = #tpu.pipeline_mode<synchronous>, transform_indices = @transform_5, window_bounds = array<i64: 1, 32>}, {pipeline_mode = #tpu.pipeline_mode<synchronous>, transform_indices = @transform_6, window_bounds = array<i64: 32, 32>}, {pipeline_mode = #tpu.pipeline_mode<synchronous>, transform_indices = @transform_7, window_bounds = array<i64: 1, 32>}, {pipeline_mode = #tpu.pipeline_mode<synchronous>, transform_indices = @transform_8, window_bounds = array<i64: 32, 32>}, {pipeline_mode = #tpu.pipeline_mode<synchronous>, transform_indices = @transform_9, window_bounds = array<i64: 1, 32>}, {pipeline_mode = #tpu.pipeline_mode<synchronous>, transform_indices = @transform_10, window_bounds = array<i64: 1, 32>}, {pipeline_mode = #tpu.pipeline_mode<synchronous>, transform_indices = @transform_11, window_bounds = array<i64: 1, 1>}, {transform_indices = @transform_12, window_bounds = array<i64: 3, 20>}]} {
    %c0 = arith.constant 0 : index
    %c0_0 = arith.constant 0 : index
    %0 = vector.load %arg1[%c0, %c0_0] : memref<20x128xf32, #tpu.memory_space<vmem>>, vector<20x128xf32>
    %c0_1 = arith.constant 0 : index
    %c0_2 = arith.constant 0 : index
    %1 = vector.load %arg2[%c0_1, %c0_2] : memref<20x128xf32, #tpu.memory_space<vmem>>, vector<20x128xf32>
    %c0_3 = arith.constant 0 : index
    %c0_4 = arith.constant 0 : index
    %2 = vector.load %arg3[%c0_3, %c0_4] : memref<128x32xf32, #tpu.memory_space<vmem>>, vector<128x32xf32>
    %c0_5 = arith.constant 0 : index
    %c0_6 = arith.constant 0 : index
    %3 = vector.load %arg4[%c0_5, %c0_6] : memref<1x32xf32, #tpu.memory_space<vmem>>, vector<1x32xf32>
    %cst = arith.constant dense<0.000000e+00> : vector<20x32xf32>
    %4 = tpu.matmul %0, %2, %cst {dimension_numbers = #tpu.dot_dimension_numbers<[1], [0], [0], [1], [0, 0, 1, 1], [], []>} : vector<20x128xf32>, vector<128x32xf32>, vector<20x32xf32> -> vector<20x32xf32>
    %5 = vector.broadcast %3 : vector<1x32xf32> to vector<20x32xf32>
    %6 = arith.addf %4, %5 : vector<20x32xf32>
    %cst_7 = arith.constant 0.000000e+00 : f32
    %7 = vector.broadcast %cst_7 : f32 to vector<20x32xf32>
    %8 = arith.maximumf %6, %7 : vector<20x32xf32>
    %cst_8 = arith.constant dense<0.000000e+00> : vector<20x32xf32>
    %9 = tpu.matmul %1, %2, %cst_8 {dimension_numbers = #tpu.dot_dimension_numbers<[1], [0], [0], [1], [0, 0, 1, 1], [], []>} : vector<20x128xf32>, vector<128x32xf32>, vector<20x32xf32> -> vector<20x32xf32>
    %10 = vector.broadcast %3 : vector<1x32xf32> to vector<20x32xf32>
    %11 = arith.addf %9, %10 : vector<20x32xf32>
    %cst_9 = arith.constant 0.000000e+00 : f32
    %12 = vector.broadcast %cst_9 : f32 to vector<20x32xf32>
    %13 = arith.maximumf %11, %12 : vector<20x32xf32>
    %c0_10 = arith.constant 0 : index
    %c0_11 = arith.constant 0 : index
    %14 = vector.load %arg5[%c0_10, %c0_11] : memref<32x32xf32, #tpu.memory_space<vmem>>, vector<32x32xf32>
    %c0_12 = arith.constant 0 : index
    %c0_13 = arith.constant 0 : index
    %15 = vector.load %arg6[%c0_12, %c0_13] : memref<1x32xf32, #tpu.memory_space<vmem>>, vector<1x32xf32>
    %cst_14 = arith.constant dense<0.000000e+00> : vector<20x32xf32>
    %16 = tpu.matmul %8, %14, %cst_14 {dimension_numbers = #tpu.dot_dimension_numbers<[1], [0], [0], [1], [0, 0, 1, 1], [], []>} : vector<20x32xf32>, vector<32x32xf32>, vector<20x32xf32> -> vector<20x32xf32>
    %17 = vector.broadcast %15 : vector<1x32xf32> to vector<20x32xf32>
    %18 = arith.addf %16, %17 : vector<20x32xf32>
    %cst_15 = arith.constant 0.000000e+00 : f32
    %19 = vector.broadcast %cst_15 : f32 to vector<20x32xf32>
    %20 = arith.maximumf %18, %19 : vector<20x32xf32>
    %cst_16 = arith.constant dense<0.000000e+00> : vector<20x32xf32>
    %21 = tpu.matmul %13, %14, %cst_16 {dimension_numbers = #tpu.dot_dimension_numbers<[1], [0], [0], [1], [0, 0, 1, 1], [], []>} : vector<20x32xf32>, vector<32x32xf32>, vector<20x32xf32> -> vector<20x32xf32>
    %22 = vector.broadcast %15 : vector<1x32xf32> to vector<20x32xf32>
    %23 = arith.addf %21, %22 : vector<20x32xf32>
    %cst_17 = arith.constant 0.000000e+00 : f32
    %24 = vector.broadcast %cst_17 : f32 to vector<20x32xf32>
    %25 = arith.maximumf %23, %24 : vector<20x32xf32>
    %c0_18 = arith.constant 0 : index
    %c0_19 = arith.constant 0 : index
    %26 = vector.load %arg7[%c0_18, %c0_19] : memref<32x32xf32, #tpu.memory_space<vmem>>, vector<32x32xf32>
    %c0_20 = arith.constant 0 : index
    %c0_21 = arith.constant 0 : index
    %27 = vector.load %arg8[%c0_20, %c0_21] : memref<1x32xf32, #tpu.memory_space<vmem>>, vector<1x32xf32>
    %cst_22 = arith.constant dense<0.000000e+00> : vector<20x32xf32>
    %28 = tpu.matmul %20, %26, %cst_22 {dimension_numbers = #tpu.dot_dimension_numbers<[1], [0], [0], [1], [0, 0, 1, 1], [], []>} : vector<20x32xf32>, vector<32x32xf32>, vector<20x32xf32> -> vector<20x32xf32>
    %29 = vector.broadcast %27 : vector<1x32xf32> to vector<20x32xf32>
    %30 = arith.addf %28, %29 : vector<20x32xf32>
    %cst_23 = arith.constant 0.000000e+00 : f32
    %31 = vector.broadcast %cst_23 : f32 to vector<20x32xf32>
    %32 = arith.maximumf %30, %31 : vector<20x32xf32>
    %cst_24 = arith.constant dense<0.000000e+00> : vector<20x32xf32>
    %33 = tpu.matmul %25, %26, %cst_24 {dimension_numbers = #tpu.dot_dimension_numbers<[1], [0], [0], [1], [0, 0, 1, 1], [], []>} : vector<20x32xf32>, vector<32x32xf32>, vector<20x32xf32> -> vector<20x32xf32>
    %34 = vector.broadcast %27 : vector<1x32xf32> to vector<20x32xf32>
    %35 = arith.addf %33, %34 : vector<20x32xf32>
    %cst_25 = arith.constant 0.000000e+00 : f32
    %36 = vector.broadcast %cst_25 : f32 to vector<20x32xf32>
    %37 = arith.maximumf %35, %36 : vector<20x32xf32>
    %c0_26 = arith.constant 0 : index
    %c0_27 = arith.constant 0 : index
    %38 = vector.load %arg9[%c0_26, %c0_27] : memref<32x32xf32, #tpu.memory_space<vmem>>, vector<32x32xf32>
    %c0_28 = arith.constant 0 : index
    %c0_29 = arith.constant 0 : index
    %39 = vector.load %arg10[%c0_28, %c0_29] : memref<1x32xf32, #tpu.memory_space<vmem>>, vector<1x32xf32>
    %cst_30 = arith.constant dense<0.000000e+00> : vector<20x32xf32>
    %40 = tpu.matmul %32, %38, %cst_30 {dimension_numbers = #tpu.dot_dimension_numbers<[1], [0], [0], [1], [0, 0, 1, 1], [], []>} : vector<20x32xf32>, vector<32x32xf32>, vector<20x32xf32> -> vector<20x32xf32>
    %41 = vector.broadcast %39 : vector<1x32xf32> to vector<20x32xf32>
    %42 = arith.addf %40, %41 : vector<20x32xf32>
    %cst_31 = arith.constant 0.000000e+00 : f32
    %43 = vector.broadcast %cst_31 : f32 to vector<20x32xf32>
    %44 = arith.maximumf %42, %43 : vector<20x32xf32>
    %cst_32 = arith.constant dense<0.000000e+00> : vector<20x32xf32>
    %45 = tpu.matmul %37, %38, %cst_32 {dimension_numbers = #tpu.dot_dimension_numbers<[1], [0], [0], [1], [0, 0, 1, 1], [], []>} : vector<20x32xf32>, vector<32x32xf32>, vector<20x32xf32> -> vector<20x32xf32>
    %46 = vector.broadcast %39 : vector<1x32xf32> to vector<20x32xf32>
    %47 = arith.addf %45, %46 : vector<20x32xf32>
    %cst_33 = arith.constant 0.000000e+00 : f32
    %48 = vector.broadcast %cst_33 : f32 to vector<20x32xf32>
    %49 = arith.maximumf %47, %48 : vector<20x32xf32>
    %c0_34 = arith.constant 0 : index
    %c0_35 = arith.constant 0 : index
    %50 = vector.load %arg11[%c0_34, %c0_35] : memref<1x32xf32, #tpu.memory_space<vmem>>, vector<1x32xf32>
    %c0_36 = arith.constant 0 : index
    %c0_37 = arith.constant 0 : index
    %51 = vector.load %arg12[%c0_36, %c0_37] : memref<1x1xf32, #tpu.memory_space<vmem>>, vector<1x1xf32>
    %52 = vector.broadcast %50 : vector<1x32xf32> to vector<20x32xf32>
    %53 = arith.mulf %44, %52 : vector<20x32xf32>
    %cst_38 = arith.constant dense<0.000000e+00> : vector<20xf32>
    %54 = vector.multi_reduction <add>, %53, %cst_38 [1] : vector<20x32xf32> to vector<20xf32>
    %55 = vector.shape_cast %54 : vector<20xf32> to vector<20x1xf32>
    %56 = vector.broadcast %51 : vector<1x1xf32> to vector<20x1xf32>
    %57 = arith.addf %55, %56 : vector<20x1xf32>
    %58 = vector.broadcast %50 : vector<1x32xf32> to vector<20x32xf32>
    %59 = arith.mulf %49, %58 : vector<20x32xf32>
    %cst_39 = arith.constant dense<0.000000e+00> : vector<20xf32>
    %60 = vector.multi_reduction <add>, %59, %cst_39 [1] : vector<20x32xf32> to vector<20xf32>
    %61 = vector.shape_cast %60 : vector<20xf32> to vector<20x1xf32>
    %62 = vector.broadcast %51 : vector<1x1xf32> to vector<20x1xf32>
    %63 = arith.addf %61, %62 : vector<20x1xf32>
    %64 = tpu.transpose %57, [1, 0] : vector<20x1xf32> -> vector<1x20xf32>
    %65 = tpu.transpose %63, [1, 0] : vector<20x1xf32> -> vector<1x20xf32>
    %66 = arith.subf %64, %65 : vector<1x20xf32>
    %67 = tpu.concatenate %64, %65, %66 in 0 : vector<1x20xf32>, vector<1x20xf32>, vector<1x20xf32> -> vector<3x20xf32>
    %c0_40 = arith.constant 0 : index
    %c0_41 = arith.constant 0 : index
    %68 = vector.load %arg13[%c0_40, %c0_41] : memref<3x20xf32, #tpu.memory_space<vmem>>, vector<3x20xf32>
    tpu.vector_store %arg13[%c0_40, %c0_41], %67 {strides = array<i32>} : memref<3x20xf32, #tpu.memory_space<vmem>>, vector<3x20xf32>,
    return
  }
  func.func @transform_0(%arg0: i32) -> (i32, i32) {
    %c0_i32 = arith.constant 0 : i32
    %c0_i32_0 = arith.constant 0 : i32
    return %arg0, %c0_i32 : i32, i32
  }
  func.func @transform_1(%arg0: i32) -> (i32, i32) {
    %c0_i32 = arith.constant 0 : i32
    %c0_i32_0 = arith.constant 0 : i32
    return %arg0, %c0_i32 : i32, i32
  }
  func.func @transform_2(%arg0: i32) -> (i32, i32) {
    %c0_i32 = arith.constant 0 : i32
    %c0_i32_0 = arith.constant 0 : i32
    %c0_i32_1 = arith.constant 0 : i32
    return %c0_i32, %c0_i32_0 : i32, i32
  }
  func.func @transform_3(%arg0: i32) -> (i32, i32) {
    %c0_i32 = arith.constant 0 : i32
    %c0_i32_0 = arith.constant 0 : i32
    %c0_i32_1 = arith.constant 0 : i32
    return %c0_i32, %c0_i32_0 : i32, i32
  }
  func.func @transform_4(%arg0: i32) -> (i32, i32) {
    %c0_i32 = arith.constant 0 : i32
    %c0_i32_0 = arith.constant 0 : i32
    %c0_i32_1 = arith.constant 0 : i32
    return %c0_i32, %c0_i32_0 : i32, i32
  }
  func.func @transform_5(%arg0: i32) -> (i32, i32) {
    %c0_i32 = arith.constant 0 : i32
    %c0_i32_0 = arith.constant 0 : i32
    %c0_i32_1 = arith.constant 0 : i32
    return %c0_i32, %c0_i32_0 : i32, i32
  }
  func.func @transform_6(%arg0: i32) -> (i32, i32) {
    %c0_i32 = arith.constant 0 : i32
    %c0_i32_0 = arith.constant 0 : i32
    %c0_i32_1 = arith.constant 0 : i32
    return %c0_i32, %c0_i32_0 : i32, i32
  }
  func.func @transform_7(%arg0: i32) -> (i32, i32) {
    %c0_i32 = arith.constant 0 : i32
    %c0_i32_0 = arith.constant 0 : i32
    %c0_i32_1 = arith.constant 0 : i32
    return %c0_i32, %c0_i32_0 : i32, i32
  }
  func.func @transform_8(%arg0: i32) -> (i32, i32) {
    %c0_i32 = arith.constant 0 : i32
    %c0_i32_0 = arith.constant 0 : i32
    %c0_i32_1 = arith.constant 0 : i32
    return %c0_i32, %c0_i32_0 : i32, i32
  }
  func.func @transform_9(%arg0: i32) -> (i32, i32) {
    %c0_i32 = arith.constant 0 : i32
    %c0_i32_0 = arith.constant 0 : i32
    %c0_i32_1 = arith.constant 0 : i32
    return %c0_i32, %c0_i32_0 : i32, i32
  }
  func.func @transform_10(%arg0: i32) -> (i32, i32) {
    %c0_i32 = arith.constant 0 : i32
    %c0_i32_0 = arith.constant 0 : i32
    %c0_i32_1 = arith.constant 0 : i32
    return %c0_i32, %c0_i32_0 : i32, i32
  }
  func.func @transform_11(%arg0: i32) -> (i32, i32) {
    %c0_i32 = arith.constant 0 : i32
    %c0_i32_0 = arith.constant 0 : i32
    %c0_i32_1 = arith.constant 0 : i32
    return %c0_i32, %c0_i32_0 : i32, i32
  }
  func.func @transform_12(%arg0: i32) -> (i32, i32) {
    %c0_i32 = arith.constant 0 : i32
    %c0_i32_0 = arith.constant 0 : i32
    return %c0_i32, %arg0 : i32, i32
  }
}

</mosaic_0001>

<llo_original>
// kernel: ranknet_forward.1
$region0: #{ranknet_forward.1}
  #allocation0 [shape = 'u32[]', space=smem, size = 0x4, offset = 0x4, fixed_abs, tag = 'smem constant byte address 0x4 - core index']
  #allocation1 [shape = 'u32[144,128]{1,0:T(1,128)}', space=vmem, size = 0x12000, scoped, tag = 'internal scratch']
  #allocation2 [shape = 'f32[1,1]{1,0:T(1,128)S(1)}', space=vmem, size = 0x200, scoped, tag = 'scoped memory for ranknet_forward.1']
  %s0 = inlined_call_operand.vmem [shape: f32[20,128], index: 0, kind: input, shape index: {}]
  %s1 = inlined_call_operand.vmem [shape: f32[20,128], index: 1, kind: input, shape index: {}]
  %s2 = inlined_call_operand.vmem [shape: f32[128,32], index: 2, kind: input, shape index: {}]
  %s3 = inlined_call_operand.vmem [shape: f32[1,32], index: 3, kind: input, shape index: {}]
  %s4 = inlined_call_operand.vmem [shape: f32[32,32], index: 4, kind: input, shape index: {}]
  %s5 = inlined_call_operand.vmem [shape: f32[1,32], index: 5, kind: input, shape index: {}]
  %s6 = inlined_call_operand.vmem [shape: f32[32,32], index: 6, kind: input, shape index: {}]
  %s7 = inlined_call_operand.vmem [shape: f32[1,32], index: 7, kind: input, shape index: {}]
  %s8 = inlined_call_operand.vmem [shape: f32[32,32], index: 8, kind: input, shape index: {}]
  %s9 = inlined_call_operand.vmem [shape: f32[1,32], index: 9, kind: input, shape index: {}]
  %s10 = inlined_call_operand.vmem [shape: f32[1,32], index: 10, kind: input, shape index: {}]
  %s11 = inlined_call_operand.<no memory space> [shape: f32[1,1], index: 11, kind: input, shape index: {}]
  %s12 = inlined_call_operand.vmem [shape: f32[3,20], index: 12, kind: output, shape index: {}]
  %s13 = sld [smem:[#allocation0]]
  $region58: #{ranknet_forward.1} parent=0
    _
  %s15 = ssub.s32 1, %s13
  %s16 = scalar_select 0, %s15, %s13
  %v17 = vstv %s11
  %18 = vst [vmem:[#allocation2] sm:$0x1] %v17
  // Predicated region
  $region2: #{ranknet_forward.1} parent=0 // pred_check
    _
  $region3: #{ranknet_forward.1} parent=0 // pred_check_branch
    %20 = sbr.rel (0) target = $region5
  $region4: #{ranknet_forward.1} parent=0 // pred_region
    _
  $region5: #{ranknet_forward.1} parent=0 // pred_fallthru
    _
  // Predicated region
  $region6: #{ranknet_forward.1} parent=0 // pred_check
    _
  $region7: #{ranknet_forward.1} parent=0 // pred_check_branch
    %22 = sbr.rel (0) target = $region9
  $region8: #{ranknet_forward.1} parent=0 // pred_region
    _
  $region9: #{ranknet_forward.1} parent=0 // pred_fallthru
    _
  // Predicated region
  $region10: #{ranknet_forward.1} parent=0 // pred_check
    _
  $region11: #{ranknet_forward.1} parent=0 // pred_check_branch
    %24 = sbr.rel (0) target = $region13
  $region12: #{ranknet_forward.1} parent=0 // pred_region
    _
  $region13: #{ranknet_forward.1} parent=0 // pred_fallthru
    _
  // Predicated region
  $region14: #{ranknet_forward.1} parent=0 // pred_check
    _
  $region15: #{ranknet_forward.1} parent=0 // pred_check_branch
    %26 = sbr.rel (0) target = $region17
  $region16: #{ranknet_forward.1} parent=0 // pred_region
    _
  $region17: #{ranknet_forward.1} parent=0 // pred_fallthru
    _
  // Predicated region
  $region18: #{ranknet_forward.1} parent=0 // pred_check
    _
  $region19: #{ranknet_forward.1} parent=0 // pred_check_branch
    %28 = sbr.rel (0) target = $region21
  $region20: #{ranknet_forward.1} parent=0 // pred_region
    _
  $region21: #{ranknet_forward.1} parent=0 // pred_fallthru
    _
  // Predicated region
  $region22: #{ranknet_forward.1} parent=0 // pred_check
    _
  $region23: #{ranknet_forward.1} parent=0 // pred_check_branch
    %30 = sbr.rel (0) target = $region25
  $region24: #{ranknet_forward.1} parent=0 // pred_region
    _
  $region25: #{ranknet_forward.1} parent=0 // pred_fallthru
    _
  // Predicated region
  $region26: #{ranknet_forward.1} parent=0 // pred_check
    _
  $region27: #{ranknet_forward.1} parent=0 // pred_check_branch
    %32 = sbr.rel (0) target = $region29
  $region28: #{ranknet_forward.1} parent=0 // pred_region
    _
  $region29: #{ranknet_forward.1} parent=0 // pred_fallthru
    _
  // Predicated region
  $region30: #{ranknet_forward.1} parent=0 // pred_check
    _
  $region31: #{ranknet_forward.1} parent=0 // pred_check_branch
    %34 = sbr.rel (0) target = $region33
  $region32: #{ranknet_forward.1} parent=0 // pred_region
    _
  $region33: #{ranknet_forward.1} parent=0 // pred_fallthru
    _
  // Predicated region
  $region34: #{ranknet_forward.1} parent=0 // pred_check
    _
  $region35: #{ranknet_forward.1} parent=0 // pred_check_branch
    %36 = sbr.rel (0) target = $region37
  $region36: #{ranknet_forward.1} parent=0 // pred_region
    _
  $region37: #{ranknet_forward.1} parent=0 // pred_fallthru
    _
  // Predicated region
  $region38: #{ranknet_forward.1} parent=0 // pred_check
    _
  $region39: #{ranknet_forward.1} parent=0 // pred_check_branch
    %38 = sbr.rel (0) target = $region41
  $region40: #{ranknet_forward.1} parent=0 // pred_region
    _
  $region41: #{ranknet_forward.1} parent=0 // pred_fallthru
    _
  // Predicated region
  $region42: #{ranknet_forward.1} parent=0 // pred_check
    _
  $region43: #{ranknet_forward.1} parent=0 // pred_check_branch
    %40 = sbr.rel (0) target = $region45
  $region44: #{ranknet_forward.1} parent=0 // pred_region
    _
  $region45: #{ranknet_forward.1} parent=0 // pred_fallthru
    _
  // Predicated region
  $region46: #{ranknet_forward.1} parent=0 // pred_check
    _
  $region47: #{ranknet_forward.1} parent=0 // pred_check_branch
    %42 = sbr.rel (0) target = $region49
  $region48: #{ranknet_forward.1} parent=0 // pred_region
    _
  $region49: #{ranknet_forward.1} parent=0 // pred_fallthru
    _
  %v43 = vld [vmem:[%s0] sm:$0xff]
  %v44 = vld [vmem:[%s0 + $0x8] sm:$0xff]
  %v45 = vld [vmem:[%s0 + $0x10] sm:$0xf]
  %v46 = vld [vmem:[%s1] sm:$0xff]
  %v47 = vld [vmem:[%s1 + $0x8] sm:$0xff]
  %v48 = vld [vmem:[%s1 + $0x10] sm:$0xf]
  %v49 = vld [vmem:[%s2] sm:$0xff]
  %v50 = vld [vmem:[%s2 + $0x8] sm:$0xff]
  %v51 = vld [vmem:[%s2 + $0x10] sm:$0xff]
  %v52 = vld [vmem:[%s2 + $0x18] sm:$0xff]
  %v53 = vld [vmem:[%s2 + $0x20] sm:$0xff]
  %v54 = vld [vmem:[%s2 + $0x28] sm:$0xff]
  %v55 = vld [vmem:[%s2 + $0x30] sm:$0xff]
  %v56 = vld [vmem:[%s2 + $0x38] sm:$0xff]
  %v57 = vld [vmem:[%s2 + $0x40] sm:$0xff]
  %v58 = vld [vmem:[%s2 + $0x48] sm:$0xff]
  %v59 = vld [vmem:[%s2 + $0x50] sm:$0xff]
  %v60 = vld [vmem:[%s2 + $0x58] sm:$0xff]
  %v61 = vld [vmem:[%s2 + $0x60] sm:$0xff]
  %v62 = vld [vmem:[%s2 + $0x68] sm:$0xff]
  %v63 = vld [vmem:[%s2 + $0x70] sm:$0xff]
  %v64 = vld [vmem:[%s2 + $0x78] sm:$0xff]
  %v65 = vld [vmem:[%s3] sm:$0x1]
  %v67 = vlaneseq
  %v68 = vshrl.u32 %v67, 7
  %v69 = vsub.s32 0, %v68
  %v70 = vrot.slane %v65, %v69
  %72 = vmatprep.subr.mxu0 0.0
  %73 = vmatpush1.msra.mxu0 %v49
  %74 = vmatprep.subr.mxu0 0.0
  %75 = vmatpush1.msra.mxu0 %v50
  %76 = vmatprep.subr.mxu0 0.0
  %77 = vmatpush1.msra.mxu0 %v51
  %78 = vmatprep.subr.mxu0 0.0
  %79 = vmatpush1.msra.mxu0 %v52
  %80 = vmatprep.subr.mxu0 0.0
  %81 = vmatpush1.msra.mxu0 %v53
  %82 = vmatprep.subr.mxu0 0.0
  %83 = vmatpush1.msra.mxu0 %v54
  %84 = vmatprep.subr.mxu0 0.0
  %85 = vmatpush1.msra.mxu0 %v55
  %86 = vmatprep.subr.mxu0 0.0
  %87 = vmatpush1.msra.mxu0 %v56
  %88 = vmatprep.subr.mxu0 0.0
  %89 = vmatpush1.msra.mxu0 %v57
  %90 = vmatprep.subr.mxu0 0.0
  %91 = vmatpush1.msra.mxu0 %v58
  %92 = vmatprep.subr.mxu0 0.0
  %93 = vmatpush1.msra.mxu0 %v59
  %94 = vmatprep.subr.mxu0 0.0
  %95 = vmatpush1.msra.mxu0 %v60
  %96 = vmatprep.subr.mxu0 0.0
  %97 = vmatpush1.msra.mxu0 %v61
  %98 = vmatprep.subr.mxu0 0.0
  %99 = vmatpush1.msra.mxu0 %v62
  %100 = vmatprep.subr.mxu0 0.0
  %101 = vmatpush1.msra.mxu0 %v63
  %102 = vmatprep.subr.mxu0 0.0
  %103 = vmatpush1.msra.mxu0 %v64
  %104 = vmatprep.subr.mxu0 0.0
  %105 = vmatpush1.msra.mxu0 0.0
  %106 = vmatprep.subr.mxu0 0.0
  %107 = vmatpush1.msra.mxu0 0.0
  %108 = vmatprep.subr.mxu0 0.0
  %109 = vmatpush1.msra.mxu0 0.0
  %110 = vmatprep.subr.mxu0 0.0
  %111 = vmatpush1.msra.mxu0 0.0
  %112 = vmatprep.subr.mxu0 0.0
  %113 = vmatpush1.msra.mxu0 0.0
  %114 = vmatprep.subr.mxu0 0.0
  %115 = vmatpush1.msra.mxu0 0.0
  %116 = vmatprep.subr.mxu0 0.0
  %117 = vmatpush1.msra.mxu0 0.0
  %118 = vmatprep.subr.mxu0 0.0
  %119 = vmatpush1.msra.mxu0 0.0
  %120 = vmatprep.subr.mxu0 0.0
  %121 = vmatpush1.msra.mxu0 0.0
  %122 = vmatprep.subr.mxu0 0.0
  %123 = vmatpush1.msra.mxu0 0.0
  %124 = vmatprep.subr.mxu0 0.0
  %125 = vmatpush1.msra.mxu0 0.0
  %126 = vmatprep.subr.mxu0 0.0
  %127 = vmatpush1.msra.mxu0 0.0
  %128 = vmatprep.subr.mxu0 0.0
  %129 = vmatpush1.msra.mxu0 0.0
  %130 = vmatprep.subr.mxu0 0.0
  %131 = vmatpush1.msra.mxu0 0.0
  %132 = vmatprep.subr.mxu0 0.0
  %133 = vmatpush1.msra.mxu0 0.0
  %134 = vmatprep.subr.mxu0 0.0
  %135 = vmatpush1.msra.mxu0 0.0
  %136 = vmatprep.mubr.f32.mxu0 0.0
  %137 = vmatmul.mubr.f32.gmra.mrb[0].mxu0 %v43
  %v138 = vpop.f32.mrb[0].mxu0
  %v139 = vadd.f32 %v70, %v138
  %v140 = vpop.f32.mrb[0].mxu0
  %141 = vmatprep.mubr.f32.mxu0 0.0
  %142 = vmatmul.mubr.f32.gmra.mrb[0].mxu0 %v44
  %v143 = vpop.f32.mrb[0].mxu0
  %v144 = vadd.f32 %v70, %v143
  %v145 = vpop.f32.mrb[0].mxu0
  %146 = vmatprep.mubr.f32.mxu0 0.0
  %147 = vmatmul.mubr.f32.gmra.mrb[0].mxu0 %v45
  %v148 = vpop.f32.mrb[0].mxu0
  %v149 = vadd.f32 %v70, %v148
  %v150 = vpop.f32.mrb[0].mxu0
  %151 = vdwg.mxu0
  %v152 = vmax.f32 %v139, 0.0
  %v153 = vmax.f32 %v144, 0.0
  %v154 = vmax.f32 %v149, 0.0
  %155 = vmatprep.subr.mxu0 0.0
  %156 = vmatpush1.msra.mxu0 %v49
  %157 = vmatprep.subr.mxu0 0.0
  %158 = vmatpush1.msra.mxu0 %v50
  %159 = vmatprep.subr.mxu0 0.0
  %160 = vmatpush1.msra.mxu0 %v51
  %161 = vmatprep.subr.mxu0 0.0
  %162 = vmatpush1.msra.mxu0 %v52
  %163 = vmatprep.subr.mxu0 0.0
  %164 = vmatpush1.msra.mxu0 %v53
  %165 = vmatprep.subr.mxu0 0.0
  %166 = vmatpush1.msra.mxu0 %v54
  %167 = vmatprep.subr.mxu0 0.0
  %168 = vmatpush1.msra.mxu0 %v55
  %169 = vmatprep.subr.mxu0 0.0
  %170 = vmatpush1.msra.mxu0 %v56
  %171 = vmatprep.subr.mxu0 0.0
  %172 = vmatpush1.msra.mxu0 %v57
  %173 = vmatprep.subr.mxu0 0.0
  %174 = vmatpush1.msra.mxu0 %v58
  %175 = vmatprep.subr.mxu0 0.0
  %176 = vmatpush1.msra.mxu0 %v59
  %177 = vmatprep.subr.mxu0 0.0
  %178 = vmatpush1.msra.mxu0 %v60
  %179 = vmatprep.subr.mxu0 0.0
  %180 = vmatpush1.msra.mxu0 %v61
  %181 = vmatprep.subr.mxu0 0.0
  %182 = vmatpush1.msra.mxu0 %v62
  %183 = vmatprep.subr.mxu0 0.0
  %184 = vmatpush1.msra.mxu0 %v63
  %185 = vmatprep.subr.mxu0 0.0
  %186 = vmatpush1.msra.mxu0 %v64
  %187 = vmatprep.subr.mxu0 0.0
  %188 = vmatpush1.msra.mxu0 0.0
  %189 = vmatprep.subr.mxu0 0.0
  %190 = vmatpush1.msra.mxu0 0.0
  %191 = vmatprep.subr.mxu0 0.0
  %192 = vmatpush1.msra.mxu0 0.0
  %193 = vmatprep.subr.mxu0 0.0
  %194 = vmatpush1.msra.mxu0 0.0
  %195 = vmatprep.subr.mxu0 0.0
  %196 = vmatpush1.msra.mxu0 0.0
  %197 = vmatprep.subr.mxu0 0.0
  %198 = vmatpush1.msra.mxu0 0.0
  %199 = vmatprep.subr.mxu0 0.0
  %200 = vmatpush1.msra.mxu0 0.0
  %201 = vmatprep.subr.mxu0 0.0
  %202 = vmatpush1.msra.mxu0 0.0
  %203 = vmatprep.subr.mxu0 0.0
  %204 = vmatpush1.msra.mxu0 0.0
  %205 = vmatprep.subr.mxu0 0.0
  %206 = vmatpush1.msra.mxu0 0.0
  %207 = vmatprep.subr.mxu0 0.0
  %208 = vmatpush1.msra.mxu0 0.0
  %209 = vmatprep.subr.mxu0 0.0
  %210 = vmatpush1.msra.mxu0 0.0
  %211 = vmatprep.subr.mxu0 0.0
  %212 = vmatpush1.msra.mxu0 0.0
  %213 = vmatprep.subr.mxu0 0.0
  %214 = vmatpush1.msra.mxu0 0.0
  %215 = vmatprep.subr.mxu0 0.0
  %216 = vmatpush1.msra.mxu0 0.0
  %217 = vmatprep.subr.mxu0 0.0
  %218 = vmatpush1.msra.mxu0 0.0
  %219 = vmatprep.mubr.f32.mxu0 0.0
  %220 = vmatmul.mubr.f32.gmra.mrb[0].mxu0 %v46
  %v221 = vpop.f32.mrb[0].mxu0
  %v222 = vadd.f32 %v70, %v221
  %v223 = vpop.f32.mrb[0].mxu0
  %224 = vmatprep.mubr.f32.mxu0 0.0
  %225 = vmatmul.mubr.f32.gmra.mrb[0].mxu0 %v47
  %v226 = vpop.f32.mrb[0].mxu0
  %v227 = vadd.f32 %v70, %v226
  %v228 = vpop.f32.mrb[0].mxu0
  %229 = vmatprep.mubr.f32.mxu0 0.0
  %230 = vmatmul.mubr.f32.gmra.mrb[0].mxu0 %v48
  %v231 = vpop.f32.mrb[0].mxu0
  %v232 = vadd.f32 %v70, %v231
  %v233 = vpop.f32.mrb[0].mxu0
  %234 = vdwg.mxu0
  %v235 = vmax.f32 %v222, 0.0
  %v236 = vmax.f32 %v227, 0.0
  %v237 = vmax.f32 %v232, 0.0
  %v238 = vld [vmem:[%s4] sm:$0xff]
  %v239 = vld [vmem:[%s4 + $0x8] sm:$0xff]
  %v240 = vld [vmem:[%s4 + $0x10] sm:$0xff]
  %v241 = vld [vmem:[%s4 + $0x18] sm:$0xff]
  %v242 = vld [vmem:[%s5] sm:$0x1]
  %v244 = vlaneseq
  %v245 = vshrl.u32 %v244, 7
  %v246 = vsub.s32 0, %v245
  %v247 = vrot.slane %v242, %v246
  %vm249 = vcmask 261120
  %v251 = vsel %vm249, %v152, 0
  %v254 = vsel %vm249, %v153, 0
  %v257 = vsel %vm249, %v154, 0
  %259 = vmatprep.subr.mxu0 0.0
  %260 = vmatpush1.msra.mxu0 %v238
  %261 = vmatprep.subr.mxu0 0.0
  %262 = vmatpush1.msra.mxu0 %v239
  %263 = vmatprep.subr.mxu0 0.0
  %264 = vmatpush1.msra.mxu0 %v240
  %265 = vmatprep.subr.mxu0 0.0
  %266 = vmatpush1.msra.mxu0 %v241
  %267 = vmatprep.subr.mxu0 0.0
  %268 = vmatpush1.msra.mxu0 0.0
  %269 = vmatprep.subr.mxu0 0.0
  %270 = vmatpush1.msra.mxu0 0.0
  %271 = vmatprep.subr.mxu0 0.0
  %272 = vmatpush1.msra.mxu0 0.0
  %273 = vmatprep.subr.mxu0 0.0
  %274 = vmatpush1.msra.mxu0 0.0
  %275 = vmatprep.subr.mxu0 0.0
  %276 = vmatpush1.msra.mxu0 0.0
  %277 = vmatprep.subr.mxu0 0.0
  %278 = vmatpush1.msra.mxu0 0.0
  %279 = vmatprep.subr.mxu0 0.0
  %280 = vmatpush1.msra.mxu0 0.0
  %281 = vmatprep.subr.mxu0 0.0
  %282 = vmatpush1.msra.mxu0 0.0
  %283 = vmatprep.subr.mxu0 0.0
  %284 = vmatpush1.msra.mxu0 0.0
  %285 = vmatprep.subr.mxu0 0.0
  %286 = vmatpush1.msra.mxu0 0.0
  %287 = vmatprep.subr.mxu0 0.0
  %288 = vmatpush1.msra.mxu0 0.0
  %289 = vmatprep.subr.mxu0 0.0
  %290 = vmatpush1.msra.mxu0 0.0
  %291 = vmatprep.subr.mxu0 0.0
  %292 = vmatpush1.msra.mxu0 0.0
  %293 = vmatprep.subr.mxu0 0.0
  %294 = vmatpush1.msra.mxu0 0.0
  %295 = vmatprep.subr.mxu0 0.0
  %296 = vmatpush1.msra.mxu0 0.0
  %297 = vmatprep.subr.mxu0 0.0
  %298 = vmatpush1.msra.mxu0 0.0
  %299 = vmatprep.subr.mxu0 0.0
  %300 = vmatpush1.msra.mxu0 0.0
  %301 = vmatprep.subr.mxu0 0.0
  %302 = vmatpush1.msra.mxu0 0.0
  %303 = vmatprep.subr.mxu0 0.0
  %304 = vmatpush1.msra.mxu0 0.0
  %305 = vmatprep.subr.mxu0 0.0
  %306 = vmatpush1.msra.mxu0 0.0
  %307 = vmatprep.subr.mxu0 0.0
  %308 = vmatpush1.msra.mxu0 0.0
  %309 = vmatprep.subr.mxu0 0.0
  %310 = vmatpush1.msra.mxu0 0.0
  %311 = vmatprep.subr.mxu0 0.0
  %312 = vmatpush1.msra.mxu0 0.0
  %313 = vmatprep.subr.mxu0 0.0
  %314 = vmatpush1.msra.mxu0 0.0
  %315 = vmatprep.subr.mxu0 0.0
  %316 = vmatpush1.msra.mxu0 0.0
  %317 = vmatprep.subr.mxu0 0.0
  %318 = vmatpush1.msra.mxu0 0.0
  %319 = vmatprep.subr.mxu0 0.0
  %320 = vmatpush1.msra.mxu0 0.0
  %321 = vmatprep.subr.mxu0 0.0
  %322 = vmatpush1.msra.mxu0 0.0
  %323 = vmatprep.mubr.f32.mxu0 0.0
  %324 = vmatmul.mubr.f32.gmra.mrb[0].mxu0 %v251
  %v325 = vpop.f32.mrb[0].mxu0
  %v326 = vadd.f32 %v247, %v325
  %v327 = vpop.f32.mrb[0].mxu0
  %328 = vmatprep.mubr.f32.mxu0 0.0
  %329 = vmatmul.mubr.f32.gmra.mrb[0].mxu0 %v254
  %v330 = vpop.f32.mrb[0].mxu0
  %v331 = vadd.f32 %v247, %v330
  %v332 = vpop.f32.mrb[0].mxu0
  %333 = vmatprep.mubr.f32.mxu0 0.0
  %334 = vmatmul.mubr.f32.gmra.mrb[0].mxu0 %v257
  %v335 = vpop.f32.mrb[0].mxu0
  %v336 = vadd.f32 %v247, %v335
  %v337 = vpop.f32.mrb[0].mxu0
  %338 = vdwg.mxu0
  %v339 = vmax.f32 %v326, 0.0
  %v340 = vmax.f32 %v331, 0.0
  %v341 = vmax.f32 %v336, 0.0
  %v343 = vsel %vm249, %v235, 0
  %v346 = vsel %vm249, %v236, 0
  %v349 = vsel %vm249, %v237, 0
  %351 = vmatprep.subr.mxu0 0.0
  %352 = vmatpush1.msra.mxu0 %v238
  %353 = vmatprep.subr.mxu0 0.0
  %354 = vmatpush1.msra.mxu0 %v239
  %355 = vmatprep.subr.mxu0 0.0
  %356 = vmatpush1.msra.mxu0 %v240
  %357 = vmatprep.subr.mxu0 0.0
  %358 = vmatpush1.msra.mxu0 %v241
  %359 = vmatprep.subr.mxu0 0.0
  %360 = vmatpush1.msra.mxu0 0.0
  %361 = vmatprep.subr.mxu0 0.0
  %362 = vmatpush1.msra.mxu0 0.0
  %363 = vmatprep.subr.mxu0 0.0
  %364 = vmatpush1.msra.mxu0 0.0
  %365 = vmatprep.subr.mxu0 0.0
  %366 = vmatpush1.msra.mxu0 0.0
  %367 = vmatprep.subr.mxu0 0.0
  %368 = vmatpush1.msra.mxu0 0.0
  %369 = vmatprep.subr.mxu0 0.0
  %370 = vmatpush1.msra.mxu0 0.0
  %371 = vmatprep.subr.mxu0 0.0
  %372 = vmatpush1.msra.mxu0 0.0
  %373 = vmatprep.subr.mxu0 0.0
  %374 = vmatpush1.msra.mxu0 0.0
  %375 = vmatprep.subr.mxu0 0.0
  %376 = vmatpush1.msra.mxu0 0.0
  %377 = vmatprep.subr.mxu0 0.0
  %378 = vmatpush1.msra.mxu0 0.0
  %379 = vmatprep.subr.mxu0 0.0
  %380 = vmatpush1.msra.mxu0 0.0
  %381 = vmatprep.subr.mxu0 0.0
  %382 = vmatpush1.msra.mxu0 0.0
  %383 = vmatprep.subr.mxu0 0.0
  %384 = vmatpush1.msra.mxu0 0.0
  %385 = vmatprep.subr.mxu0 0.0
  %386 = vmatpush1.msra.mxu0 0.0
  %387 = vmatprep.subr.mxu0 0.0
  %388 = vmatpush1.msra.mxu0 0.0
  %389 = vmatprep.subr.mxu0 0.0
  %390 = vmatpush1.msra.mxu0 0.0
  %391 = vmatprep.subr.mxu0 0.0
  %392 = vmatpush1.msra.mxu0 0.0
  %393 = vmatprep.subr.mxu0 0.0
  %394 = vmatpush1.msra.mxu0 0.0
  %395 = vmatprep.subr.mxu0 0.0
  %396 = vmatpush1.msra.mxu0 0.0
  %397 = vmatprep.subr.mxu0 0.0
  %398 = vmatpush1.msra.mxu0 0.0
  %399 = vmatprep.subr.mxu0 0.0
  %400 = vmatpush1.msra.mxu0 0.0
  %401 = vmatprep.subr.mxu0 0.0
  %402 = vmatpush1.msra.mxu0 0.0
  %403 = vmatprep.subr.mxu0 0.0
  %404 = vmatpush1.msra.mxu0 0.0
  %405 = vmatprep.subr.mxu0 0.0
  %406 = vmatpush1.msra.mxu0 0.0
  %407 = vmatprep.subr.mxu0 0.0
  %408 = vmatpush1.msra.mxu0 0.0
  %409 = vmatprep.subr.mxu0 0.0
  %410 = vmatpush1.msra.mxu0 0.0
  %411 = vmatprep.subr.mxu0 0.0
  %412 = vmatpush1.msra.mxu0 0.0
  %413 = vmatprep.subr.mxu0 0.0
  %414 = vmatpush1.msra.mxu0 0.0
  %415 = vmatprep.mubr.f32.mxu0 0.0
  %416 = vmatmul.mubr.f32.gmra.mrb[0].mxu0 %v343
  %v417 = vpop.f32.mrb[0].mxu0
  %v418 = vadd.f32 %v247, %v417
  %v419 = vpop.f32.mrb[0].mxu0
  %420 = vmatprep.mubr.f32.mxu0 0.0
  %421 = vmatmul.mubr.f32.gmra.mrb[0].mxu0 %v346
  %v422 = vpop.f32.mrb[0].mxu0
  %v423 = vadd.f32 %v247, %v422
  %v424 = vpop.f32.mrb[0].mxu0
  %425 = vmatprep.mubr.f32.mxu0 0.0
  %426 = vmatmul.mubr.f32.gmra.mrb[0].mxu0 %v349
  %v427 = vpop.f32.mrb[0].mxu0
  %v428 = vadd.f32 %v247, %v427
  %v429 = vpop.f32.mrb[0].mxu0
  %430 = vdwg.mxu0
  %v431 = vmax.f32 %v418, 0.0
  %v432 = vmax.f32 %v423, 0.0
  %v433 = vmax.f32 %v428, 0.0
  %v434 = vld [vmem:[%s6] sm:$0xff]
  %v435 = vld [vmem:[%s6 + $0x8] sm:$0xff]
  %v436 = vld [vmem:[%s6 + $0x10] sm:$0xff]
  %v437 = vld [vmem:[%s6 + $0x18] sm:$0xff]
  %v438 = vld [vmem:[%s7] sm:$0x1]
  %v440 = vlaneseq
  %v441 = vshrl.u32 %v440, 7
  %v442 = vsub.s32 0, %v441
  %v443 = vrot.slane %v438, %v442
  %v446 = vsel %vm249, %v339, 0
  %v449 = vsel %vm249, %v340, 0
  %v452 = vsel %vm249, %v341, 0
  %454 = vmatprep.subr.mxu0 0.0
  %455 = vmatpush1.msra.mxu0 %v434
  %456 = vmatprep.subr.mxu0 0.0
  %457 = vmatpush1.msra.mxu0 %v435
  %458 = vmatprep.subr.mxu0 0.0
  %459 = vmatpush1.msra.mxu0 %v436
  %460 = vmatprep.subr.mxu0 0.0
  %461 = vmatpush1.msra.mxu0 %v437
  %462 = vmatprep.subr.mxu0 0.0
  %463 = vmatpush1.msra.mxu0 0.0
  %464 = vmatprep.subr.mxu0 0.0
  %465 = vmatpush1.msra.mxu0 0.0
  %466 = vmatprep.subr.mxu0 0.0
  %467 = vmatpush1.msra.mxu0 0.0
  %468 = vmatprep.subr.mxu0 0.0
  %469 = vmatpush1.msra.mxu0 0.0
  %470 = vmatprep.subr.mxu0 0.0
  %471 = vmatpush1.msra.mxu0 0.0
  %472 = vmatprep.subr.mxu0 0.0
  %473 = vmatpush1.msra.mxu0 0.0
  %474 = vmatprep.subr.mxu0 0.0
  %475 = vmatpush1.msra.mxu0 0.0
  %476 = vmatprep.subr.mxu0 0.0
  %477 = vmatpush1.msra.mxu0 0.0
  %478 = vmatprep.subr.mxu0 0.0
  %479 = vmatpush1.msra.mxu0 0.0
  %480 = vmatprep.subr.mxu0 0.0
  %481 = vmatpush1.msra.mxu0 0.0
  %482 = vmatprep.subr.mxu0 0.0
  %483 = vmatpush1.msra.mxu0 0.0
  %484 = vmatprep.subr.mxu0 0.0
  %485 = vmatpush1.msra.mxu0 0.0
  %486 = vmatprep.subr.mxu0 0.0
  %487 = vmatpush1.msra.mxu0 0.0
  %488 = vmatprep.subr.mxu0 0.0
  %489 = vmatpush1.msra.mxu0 0.0
  %490 = vmatprep.subr.mxu0 0.0
  %491 = vmatpush1.msra.mxu0 0.0
  %492 = vmatprep.subr.mxu0 0.0
  %493 = vmatpush1.msra.mxu0 0.0
  %494 = vmatprep.subr.mxu0 0.0
  %495 = vmatpush1.msra.mxu0 0.0
  %496 = vmatprep.subr.mxu0 0.0
  %497 = vmatpush1.msra.mxu0 0.0
  %498 = vmatprep.subr.mxu0 0.0
  %499 = vmatpush1.msra.mxu0 0.0
  %500 = vmatprep.subr.mxu0 0.0
  %501 = vmatpush1.msra.mxu0 0.0
  %502 = vmatprep.subr.mxu0 0.0
  %503 = vmatpush1.msra.mxu0 0.0
  %504 = vmatprep.subr.mxu0 0.0
  %505 = vmatpush1.msra.mxu0 0.0
  %506 = vmatprep.subr.mxu0 0.0
  %507 = vmatpush1.msra.mxu0 0.0
  %508 = vmatprep.subr.mxu0 0.0
  %509 = vmatpush1.msra.mxu0 0.0
  %510 = vmatprep.subr.mxu0 0.0
  %511 = vmatpush1.msra.mxu0 0.0
  %512 = vmatprep.subr.mxu0 0.0
  %513 = vmatpush1.msra.mxu0 0.0
  %514 = vmatprep.subr.mxu0 0.0
  %515 = vmatpush1.msra.mxu0 0.0
  %516 = vmatprep.subr.mxu0 0.0
  %517 = vmatpush1.msra.mxu0 0.0
  %518 = vmatprep.mubr.f32.mxu0 0.0
  %519 = vmatmul.mubr.f32.gmra.mrb[0].mxu0 %v446
  %v520 = vpop.f32.mrb[0].mxu0
  %v521 = vadd.f32 %v443, %v520
  %v522 = vpop.f32.mrb[0].mxu0
  %523 = vmatprep.mubr.f32.mxu0 0.0
  %524 = vmatmul.mubr.f32.gmra.mrb[0].mxu0 %v449
  %v525 = vpop.f32.mrb[0].mxu0
  %v526 = vadd.f32 %v443, %v525
  %v527 = vpop.f32.mrb[0].mxu0
  %528 = vmatprep.mubr.f32.mxu0 0.0
  %529 = vmatmul.mubr.f32.gmra.mrb[0].mxu0 %v452
  %v530 = vpop.f32.mrb[0].mxu0
  %v531 = vadd.f32 %v443, %v530
  %v532 = vpop.f32.mrb[0].mxu0
  %533 = vdwg.mxu0
  %v534 = vmax.f32 %v521, 0.0
  %v535 = vmax.f32 %v526, 0.0
  %v536 = vmax.f32 %v531, 0.0
  %v538 = vsel %vm249, %v431, 0
  %v541 = vsel %vm249, %v432, 0
  %v544 = vsel %vm249, %v433, 0
  %546 = vmatprep.subr.mxu0 0.0
  %547 = vmatpush1.msra.mxu0 %v434
  %548 = vmatprep.subr.mxu0 0.0
  %549 = vmatpush1.msra.mxu0 %v435
  %550 = vmatprep.subr.mxu0 0.0
  %551 = vmatpush1.msra.mxu0 %v436
  %552 = vmatprep.subr.mxu0 0.0
  %553 = vmatpush1.msra.mxu0 %v437
  %554 = vmatprep.subr.mxu0 0.0
  %555 = vmatpush1.msra.mxu0 0.0
  %556 = vmatprep.subr.mxu0 0.0
  %557 = vmatpush1.msra.mxu0 0.0
  %558 = vmatprep.subr.mxu0 0.0
  %559 = vmatpush1.msra.mxu0 0.0
  %560 = vmatprep.subr.mxu0 0.0
  %561 = vmatpush1.msra.mxu0 0.0
  %562 = vmatprep.subr.mxu0 0.0
  %563 = vmatpush1.msra.mxu0 0.0
  %564 = vmatprep.subr.mxu0 0.0
  %565 = vmatpush1.msra.mxu0 0.0
  %566 = vmatprep.subr.mxu0 0.0
  %567 = vmatpush1.msra.mxu0 0.0
  %568 = vmatprep.subr.mxu0 0.0
  %569 = vmatpush1.msra.mxu0 0.0
  %570 = vmatprep.subr.mxu0 0.0
  %571 = vmatpush1.msra.mxu0 0.0
  %572 = vmatprep.subr.mxu0 0.0
  %573 = vmatpush1.msra.mxu0 0.0
  %574 = vmatprep.subr.mxu0 0.0
  %575 = vmatpush1.msra.mxu0 0.0
  %576 = vmatprep.subr.mxu0 0.0
  %577 = vmatpush1.msra.mxu0 0.0
  %578 = vmatprep.subr.mxu0 0.0
  %579 = vmatpush1.msra.mxu0 0.0
  %580 = vmatprep.subr.mxu0 0.0
  %581 = vmatpush1.msra.mxu0 0.0
  %582 = vmatprep.subr.mxu0 0.0
  %583 = vmatpush1.msra.mxu0 0.0
  %584 = vmatprep.subr.mxu0 0.0
  %585 = vmatpush1.msra.mxu0 0.0
  %586 = vmatprep.subr.mxu0 0.0
  %587 = vmatpush1.msra.mxu0 0.0
  %588 = vmatprep.subr.mxu0 0.0
  %589 = vmatpush1.msra.mxu0 0.0
  %590 = vmatprep.subr.mxu0 0.0
  %591 = vmatpush1.msra.mxu0 0.0
  %592 = vmatprep.subr.mxu0 0.0
  %593 = vmatpush1.msra.mxu0 0.0
  %594 = vmatprep.subr.mxu0 0.0
  %595 = vmatpush1.msra.mxu0 0.0
  %596 = vmatprep.subr.mxu0 0.0
  %597 = vmatpush1.msra.mxu0 0.0
  %598 = vmatprep.subr.mxu0 0.0
  %599 = vmatpush1.msra.mxu0 0.0
  %600 = vmatprep.subr.mxu0 0.0
  %601 = vmatpush1.msra.mxu0 0.0
  %602 = vmatprep.subr.mxu0 0.0
  %603 = vmatpush1.msra.mxu0 0.0
  %604 = vmatprep.subr.mxu0 0.0
  %605 = vmatpush1.msra.mxu0 0.0
  %606 = vmatprep.subr.mxu0 0.0
  %607 = vmatpush1.msra.mxu0 0.0
  %608 = vmatprep.subr.mxu0 0.0
  %609 = vmatpush1.msra.mxu0 0.0
  %610 = vmatprep.mubr.f32.mxu0 0.0
  %611 = vmatmul.mubr.f32.gmra.mrb[0].mxu0 %v538
  %v612 = vpop.f32.mrb[0].mxu0
  %v613 = vadd.f32 %v443, %v612
  %v614 = vpop.f32.mrb[0].mxu0
  %615 = vmatprep.mubr.f32.mxu0 0.0
  %616 = vmatmul.mubr.f32.gmra.mrb[0].mxu0 %v541
  %v617 = vpop.f32.mrb[0].mxu0
  %v618 = vadd.f32 %v443, %v617
  %v619 = vpop.f32.mrb[0].mxu0
  %620 = vmatprep.mubr.f32.mxu0 0.0
  %621 = vmatmul.mubr.f32.gmra.mrb[0].mxu0 %v544
  %v622 = vpop.f32.mrb[0].mxu0
  %v623 = vadd.f32 %v443, %v622
  %v624 = vpop.f32.mrb[0].mxu0
  %625 = vdwg.mxu0
  %v626 = vmax.f32 %v613, 0.0
  %v627 = vmax.f32 %v618, 0.0
  %v628 = vmax.f32 %v623, 0.0
  %v629 = vld [vmem:[%s8] sm:$0xff]
  %v630 = vld [vmem:[%s8 + $0x8] sm:$0xff]
  %v631 = vld [vmem:[%s8 + $0x10] sm:$0xff]
  %v632 = vld [vmem:[%s8 + $0x18] sm:$0xff]
  %v633 = vld [vmem:[%s9] sm:$0x1]
  %v635 = vlaneseq
  %v636 = vshrl.u32 %v635, 7
  %v637 = vsub.s32 0, %v636
  %v638 = vrot.slane %v633, %v637
  %v641 = vsel %vm249, %v534, 0
  %v644 = vsel %vm249, %v535, 0
  %v647 = vsel %vm249, %v536, 0
  %649 = vmatprep.subr.mxu0 0.0
  %650 = vmatpush1.msra.mxu0 %v629
  %651 = vmatprep.subr.mxu0 0.0
  %652 = vmatpush1.msra.mxu0 %v630
  %653 = vmatprep.subr.mxu0 0.0
  %654 = vmatpush1.msra.mxu0 %v631
  %655 = vmatprep.subr.mxu0 0.0
  %656 = vmatpush1.msra.mxu0 %v632
  %657 = vmatprep.subr.mxu0 0.0
  %658 = vmatpush1.msra.mxu0 0.0
  %659 = vmatprep.subr.mxu0 0.0
  %660 = vmatpush1.msra.mxu0 0.0
  %661 = vmatprep.subr.mxu0 0.0
  %662 = vmatpush1.msra.mxu0 0.0
  %663 = vmatprep.subr.mxu0 0.0
  %664 = vmatpush1.msra.mxu0 0.0
  %665 = vmatprep.subr.mxu0 0.0
  %666 = vmatpush1.msra.mxu0 0.0
  %667 = vmatprep.subr.mxu0 0.0
  %668 = vmatpush1.msra.mxu0 0.0
  %669 = vmatprep.subr.mxu0 0.0
  %670 = vmatpush1.msra.mxu0 0.0
  %671 = vmatprep.subr.mxu0 0.0
  %672 = vmatpush1.msra.mxu0 0.0
  %673 = vmatprep.subr.mxu0 0.0
  %674 = vmatpush1.msra.mxu0 0.0
  %675 = vmatprep.subr.mxu0 0.0
  %676 = vmatpush1.msra.mxu0 0.0
  %677 = vmatprep.subr.mxu0 0.0
  %678 = vmatpush1.msra.mxu0 0.0
  %679 = vmatprep.subr.mxu0 0.0
  %680 = vmatpush1.msra.mxu0 0.0
  %681 = vmatprep.subr.mxu0 0.0
  %682 = vmatpush1.msra.mxu0 0.0
  %683 = vmatprep.subr.mxu0 0.0
  %684 = vmatpush1.msra.mxu0 0.0
  %685 = vmatprep.subr.mxu0 0.0
  %686 = vmatpush1.msra.mxu0 0.0
  %687 = vmatprep.subr.mxu0 0.0
  %688 = vmatpush1.msra.mxu0 0.0
  %689 = vmatprep.subr.mxu0 0.0
  %690 = vmatpush1.msra.mxu0 0.0
  %691 = vmatprep.subr.mxu0 0.0
  %692 = vmatpush1.msra.mxu0 0.0
  %693 = vmatprep.subr.mxu0 0.0
  %694 = vmatpush1.msra.mxu0 0.0
  %695 = vmatprep.subr.mxu0 0.0
  %696 = vmatpush1.msra.mxu0 0.0
  %697 = vmatprep.subr.mxu0 0.0
  %698 = vmatpush1.msra.mxu0 0.0
  %699 = vmatprep.subr.mxu0 0.0
  %700 = vmatpush1.msra.mxu0 0.0
  %701 = vmatprep.subr.mxu0 0.0
  %702 = vmatpush1.msra.mxu0 0.0
  %703 = vmatprep.subr.mxu0 0.0
  %704 = vmatpush1.msra.mxu0 0.0
  %705 = vmatprep.subr.mxu0 0.0
  %706 = vmatpush1.msra.mxu0 0.0
  %707 = vmatprep.subr.mxu0 0.0
  %708 = vmatpush1.msra.mxu0 0.0
  %709 = vmatprep.subr.mxu0 0.0
  %710 = vmatpush1.msra.mxu0 0.0
  %711 = vmatprep.subr.mxu0 0.0
  %712 = vmatpush1.msra.mxu0 0.0
  %713 = vmatprep.mubr.f32.mxu0 0.0
  %714 = vmatmul.mubr.f32.gmra.mrb[0].mxu0 %v641
  %v715 = vpop.f32.mrb[0].mxu0
  %v716 = vadd.f32 %v638, %v715
  %v717 = vpop.f32.mrb[0].mxu0
  %718 = vmatprep.mubr.f32.mxu0 0.0
  %719 = vmatmul.mubr.f32.gmra.mrb[0].mxu0 %v644
  %v720 = vpop.f32.mrb[0].mxu0
  %v721 = vadd.f32 %v638, %v720
  %v722 = vpop.f32.mrb[0].mxu0
  %723 = vmatprep.mubr.f32.mxu0 0.0
  %724 = vmatmul.mubr.f32.gmra.mrb[0].mxu0 %v647
  %v725 = vpop.f32.mrb[0].mxu0
  %v726 = vadd.f32 %v638, %v725
  %v727 = vpop.f32.mrb[0].mxu0
  %728 = vdwg.mxu0
  %v729 = vmax.f32 %v716, 0.0
  %v730 = vmax.f32 %v721, 0.0
  %v731 = vmax.f32 %v726, 0.0
  %v733 = vsel %vm249, %v626, 0
  %v736 = vsel %vm249, %v627, 0
  %v739 = vsel %vm249, %v628, 0
  %741 = vmatprep.subr.mxu0 0.0
  %742 = vmatpush1.msra.mxu0 %v629
  %743 = vmatprep.subr.mxu0 0.0
  %744 = vmatpush1.msra.mxu0 %v630
  %745 = vmatprep.subr.mxu0 0.0
  %746 = vmatpush1.msra.mxu0 %v631
  %747 = vmatprep.subr.mxu0 0.0
  %748 = vmatpush1.msra.mxu0 %v632
  %749 = vmatprep.subr.mxu0 0.0
  %750 = vmatpush1.msra.mxu0 0.0
  %751 = vmatprep.subr.mxu0 0.0
  %752 = vmatpush1.msra.mxu0 0.0
  %753 = vmatprep.subr.mxu0 0.0
  %754 = vmatpush1.msra.mxu0 0.0
  %755 = vmatprep.subr.mxu0 0.0
  %756 = vmatpush1.msra.mxu0 0.0
  %757 = vmatprep.subr.mxu0 0.0
  %758 = vmatpush1.msra.mxu0 0.0
  %759 = vmatprep.subr.mxu0 0.0
  %760 = vmatpush1.msra.mxu0 0.0
  %761 = vmatprep.subr.mxu0 0.0
  %762 = vmatpush1.msra.mxu0 0.0
  %763 = vmatprep.subr.mxu0 0.0
  %764 = vmatpush1.msra.mxu0 0.0
  %765 = vmatprep.subr.mxu0 0.0
  %766 = vmatpush1.msra.mxu0 0.0
  %767 = vmatprep.subr.mxu0 0.0
  %768 = vmatpush1.msra.mxu0 0.0
  %769 = vmatprep.subr.mxu0 0.0
  %770 = vmatpush1.msra.mxu0 0.0
  %771 = vmatprep.subr.mxu0 0.0
  %772 = vmatpush1.msra.mxu0 0.0
  %773 = vmatprep.subr.mxu0 0.0
  %774 = vmatpush1.msra.mxu0 0.0
  %775 = vmatprep.subr.mxu0 0.0
  %776 = vmatpush1.msra.mxu0 0.0
  %777 = vmatprep.subr.mxu0 0.0
  %778 = vmatpush1.msra.mxu0 0.0
  %779 = vmatprep.subr.mxu0 0.0
  %780 = vmatpush1.msra.mxu0 0.0
  %781 = vmatprep.subr.mxu0 0.0
  %782 = vmatpush1.msra.mxu0 0.0
  %783 = vmatprep.subr.mxu0 0.0
  %784 = vmatpush1.msra.mxu0 0.0
  %785 = vmatprep.subr.mxu0 0.0
  %786 = vmatpush1.msra.mxu0 0.0
  %787 = vmatprep.subr.mxu0 0.0
  %788 = vmatpush1.msra.mxu0 0.0
  %789 = vmatprep.subr.mxu0 0.0
  %790 = vmatpush1.msra.mxu0 0.0
  %791 = vmatprep.subr.mxu0 0.0
  %792 = vmatpush1.msra.mxu0 0.0
  %793 = vmatprep.subr.mxu0 0.0
  %794 = vmatpush1.msra.mxu0 0.0
  %795 = vmatprep.subr.mxu0 0.0
  %796 = vmatpush1.msra.mxu0 0.0
  %797 = vmatprep.subr.mxu0 0.0
  %798 = vmatpush1.msra.mxu0 0.0
  %799 = vmatprep.subr.mxu0 0.0
  %800 = vmatpush1.msra.mxu0 0.0
  %801 = vmatprep.subr.mxu0 0.0
  %802 = vmatpush1.msra.mxu0 0.0
  %803 = vmatprep.subr.mxu0 0.0
  %804 = vmatpush1.msra.mxu0 0.0
  %805 = vmatprep.mubr.f32.mxu0 0.0
  %806 = vmatmul.mubr.f32.gmra.mrb[0].mxu0 %v733
  %v807 = vpop.f32.mrb[0].mxu0
  %v808 = vadd.f32 %v638, %v807
  %v809 = vpop.f32.mrb[0].mxu0
  %810 = vmatprep.mubr.f32.mxu0 0.0
  %811 = vmatmul.mubr.f32.gmra.mrb[0].mxu0 %v736
  %v812 = vpop.f32.mrb[0].mxu0
  %v813 = vadd.f32 %v638, %v812
  %v814 = vpop.f32.mrb[0].mxu0
  %815 = vmatprep.mubr.f32.mxu0 0.0
  %816 = vmatmul.mubr.f32.gmra.mrb[0].mxu0 %v739
  %v817 = vpop.f32.mrb[0].mxu0
  %v818 = vadd.f32 %v638, %v817
  %v819 = vpop.f32.mrb[0].mxu0
  %820 = vdwg.mxu0
  %v821 = vmax.f32 %v808, 0.0
  %v822 = vmax.f32 %v813, 0.0
  %v823 = vmax.f32 %v818, 0.0
  %v824 = vld [vmem:[%s10] sm:$0x1]
  %v825 = vld [vmem:[#allocation2] sm:$0x1]
  %v827 = vlaneseq
  %v828 = vshrl.u32 %v827, 7
  %v829 = vsub.s32 0, %v828
  %v830 = vrot.slane %v824, %v829
  %v832 = vmul.f32 %v729, %v830
  %v833 = vmul.f32 %v730, %v830
  %v834 = vmul.f32 %v731, %v830
  %v835 = vsel %vm249, %v832, 0.0
  %836 = vadd.xlane.f32.xlu0 %v835
  %v837 = vpop.xlane.xlu0 %836
  %v838 = vsel %vm249, %v833, 0.0
  %839 = vadd.xlane.f32.xlu0 %v838
  %v840 = vpop.xlane.xlu0 %839
  %vm841 = vcmask 257024
  %v842 = vsel %vm841, %v834, 0.0
  %843 = vadd.xlane.f32.xlu0 %v842
  %v844 = vpop.xlane.xlu0 %843
  %v846 = vlaneseq
  %v847 = vshrl.u32 %v846, 7
  %v848 = vsub.s32 0, %v847
  %v849 = vrot.slane %v825, %v848
  %v851 = vadd.f32 %v837, %v849
  %v852 = vadd.f32 %v840, %v849
  %v853 = vadd.f32 %v844, %v849
  %v854 = vmul.f32 %v821, %v830
  %v855 = vmul.f32 %v822, %v830
  %v856 = vmul.f32 %v823, %v830
  %v857 = vsel %vm249, %v854, 0.0
  %858 = vadd.xlane.f32.xlu0 %v857
  %v859 = vpop.xlane.xlu0 %858
  %v860 = vsel %vm249, %v855, 0.0
  %861 = vadd.xlane.f32.xlu0 %v860
  %v862 = vpop.xlane.xlu0 %861
  %v863 = vsel %vm841, %v856, 0.0
  %864 = vadd.xlane.f32.xlu0 %v863
  %v865 = vpop.xlane.xlu0 %864
  %v866 = vadd.f32 %v859, %v849
  %v867 = vadd.f32 %v862, %v849
  %v868 = vadd.f32 %v865, %v849
  %869 = vxpose.xlu0.b32.start [1/16] %v851, 128
  %870 = vxpose.xlu0.b32.cont [2/16] %v852, 128
  %871 = vxpose.xlu0.b32.cont [3/16] %v853, 128
  %872 = vxpose.xlu0.b32.cont [4/16] 0.0, 128
  %873 = vxpose.xlu0.b32.cont [5/16] 0.0, 128
  %874 = vxpose.xlu0.b32.cont [6/16] 0.0, 128
  %875 = vxpose.xlu0.b32.cont [7/16] 0.0, 128
  %876 = vxpose.xlu0.b32.cont [8/16] 0.0, 128
  %877 = vxpose.xlu0.b32.cont [9/16] 0.0, 128
  %878 = vxpose.xlu0.b32.cont [10/16] 0.0, 128
  %879 = vxpose.xlu0.b32.cont [11/16] 0.0, 128
  %880 = vxpose.xlu0.b32.cont [12/16] 0.0, 128
  %881 = vxpose.xlu0.b32.cont [13/16] 0.0, 128
  %882 = vxpose.xlu0.b32.cont [14/16] 0.0, 128
  %883 = vxpose.xlu0.b32.cont [15/16] 0.0, 128
  %884 = vxpose.xlu0.b32.end [16/16] 0.0, 128
  %v885 = vpop.trf.xlu0
  %v886 = vpop.trf.xlu0
  %v887 = vpop.trf.xlu0
  %v888 = vpop.trf.xlu0
  %v889 = vpop.trf.xlu0
  %v890 = vpop.trf.xlu0
  %v891 = vpop.trf.xlu0
  %v892 = vpop.trf.xlu0
  %v893 = vpop.trf.xlu0
  %v894 = vpop.trf.xlu0
  %v895 = vpop.trf.xlu0
  %v896 = vpop.trf.xlu0
  %v897 = vpop.trf.xlu0
  %v898 = vpop.trf.xlu0
  %v899 = vpop.trf.xlu0
  %v900 = vpop.trf.xlu0
  %901 = vxpose.xlu0.b32.start [1/16] %v866, 128
  %902 = vxpose.xlu0.b32.cont [2/16] %v867, 128
  %903 = vxpose.xlu0.b32.cont [3/16] %v868, 128
  %904 = vxpose.xlu0.b32.cont [4/16] 0.0, 128
  %905 = vxpose.xlu0.b32.cont [5/16] 0.0, 128
  %906 = vxpose.xlu0.b32.cont [6/16] 0.0, 128
  %907 = vxpose.xlu0.b32.cont [7/16] 0.0, 128
  %908 = vxpose.xlu0.b32.cont [8/16] 0.0, 128
  %909 = vxpose.xlu0.b32.cont [9/16] 0.0, 128
  %910 = vxpose.xlu0.b32.cont [10/16] 0.0, 128
  %911 = vxpose.xlu0.b32.cont [11/16] 0.0, 128
  %912 = vxpose.xlu0.b32.cont [12/16] 0.0, 128
  %913 = vxpose.xlu0.b32.cont [13/16] 0.0, 128
  %914 = vxpose.xlu0.b32.cont [14/16] 0.0, 128
  %915 = vxpose.xlu0.b32.cont [15/16] 0.0, 128
  %916 = vxpose.xlu0.b32.end [16/16] 0.0, 128
  %v917 = vpop.trf.xlu0
  %v918 = vpop.trf.xlu0
  %v919 = vpop.trf.xlu0
  %v920 = vpop.trf.xlu0
  %v921 = vpop.trf.xlu0
  %v922 = vpop.trf.xlu0
  %v923 = vpop.trf.xlu0
  %v924 = vpop.trf.xlu0
  %v925 = vpop.trf.xlu0
  %v926 = vpop.trf.xlu0
  %v927 = vpop.trf.xlu0
  %v928 = vpop.trf.xlu0
  %v929 = vpop.trf.xlu0
  %v930 = vpop.trf.xlu0
  %v931 = vpop.trf.xlu0
  %v932 = vpop.trf.xlu0
  %v933 = vsub.f32 %v885, %v917
  %v935 = vrot.slane %v917, 7
  %v938 = vrot.slane %v933, 6
  %vm940 = vcmask 1040384
  %v941 = vsel %vm940, %v885, %v935
  %vm942 = vcmask 1041408
  %v943 = vsel %vm942, %v941, %v938
  %vm944 = vcmask 157696
  %945 = vst.msk [vmem:[%s12] sm:$0x7] %vm944, %v943
  // Predicated region
  $region50: #{ranknet_forward.1} parent=0 // pred_check
    _
  $region51: #{ranknet_forward.1} parent=0 // pred_check_branch
    %947 = sbr.rel (0) target = $region53
  $region52: #{ranknet_forward.1} parent=0 // pred_region
    _
  $region53: #{ranknet_forward.1} parent=0 // pred_fallthru
    _
  // Predicated region
  $region54: #{ranknet_forward.1} parent=0 // pred_check
    _
  $region55: #{ranknet_forward.1} parent=0 // pred_check_branch
    %949 = sbr.rel (0) target = $region57
  $region56: #{ranknet_forward.1} parent=0 // pred_region
    _
  $region57: #{ranknet_forward.1} parent=0 // pred_fallthru
    _

</llo_original>
